<compile_context>
chip_gen: v7x
topology: tpu7x:2x2x1
jax: 0.10.0
libtpu: 0.0.40
codegen_flags: <defaults>
</compile_context>

<pallas_src>
import functools

import jax
import jax.numpy as jnp
from jax import lax
from jax.experimental import pallas as pl
from jax.experimental.pallas import tpu as pltpu


# ----------------------------------------------------------------------------
# helpers
# ----------------------------------------------------------------------------
def autopad(kernel_size, padding=None):
    if padding is None:
        padding = kernel_size // 2 if isinstance(kernel_size, int) else [
            x // 2 for x in kernel_size
        ]
    return padding


def _pair(v):
    if isinstance(v, (tuple, list)):
        return int(v[0]), int(v[1])
    return int(v), int(v)


def _round_up(x, m):
    return (x + m - 1) // m * m


def _is_v5e():
    try:
        kind = jax.devices()[0].device_kind.lower()
    except Exception:
        return False
    return ("v5 lite" in kind) or ("v5e" in kind) or ("v5litepod" in kind)


def _vmem_limit_bytes():
    # Budget against physical VMEM with headroom (v5e/v6e 128 MiB -> 64 MiB, v7x 64 -> 32).
    try:
        cap = pltpu.get_tpu_info().vmem_capacity_bytes
    except Exception:
        cap = 64 * 1024 * 1024
    return int(max(32 * 1024 * 1024, min(cap // 2, 96 * 1024 * 1024)))


def _pick_cout_tile(cout):
    # v5e MXU is 4x128x128 -> cap the LHS tile at 128 there; 256 on v6e/v7x.
    cap = 128 if _is_v5e() else 256
    for t in (256, 128, 64, 32, 16, 8):
        if t <= cap and cout % t == 0:
            return t
    return cout


def _pick_batch_block(n, cin, p, tco, lpad, ktot, budget):
    """Largest divisor of n whose (double-buffered) blocks + slab fit the VMEM budget."""
    best = 1
    for nb in range(1, n + 1):
        if n % nb:
            continue
        x_b = nb * cin * p * 2            # bf16 input block
        o_b = nb * tco * lpad * 4         # f32 output block
        w_b = tco * ktot * 2              # bf16 weight block
        slab_b = ktot * nb * lpad * 2     # bf16 im2col scratch (single-buffered)
        total = 2 * (x_b + o_b + w_b) + slab_b
        if total <= int(budget * 0.8) and nb * lpad <= 32768:
            best = nb
    return best


# ----------------------------------------------------------------------------
# Pallas kernel: VMEM im2col slab + single K=KH*KW*Cin matmul + shift + SiLU
# ----------------------------------------------------------------------------
def _make_kernel(tap_starts, cin, lpad, nb):
    def kernel(x_ref, w_ref, shift_ref, o_ref, slab_ref):
        # x_ref:     (NB, Cin, P)           bf16  padded images, (H,W) flat on lanes
        # w_ref:     (TCout, KH*KW*Cin)     bf16  BN-scale-folded weights, K=(kh,kw,cin)
        # shift_ref: (TCout, 1)             f32   folded BN shift
        # o_ref:     (NB, TCout, Lpad)      f32   lane-dense NCHW-ordered output block
        # slab_ref:  (KH*KW*Cin, NB*Lpad)   bf16  VMEM im2col scratch
        for i in range(nb):                                   # static unroll (NB)
            for t, s in enumerate(tap_starts):                # static unroll (KH*KW)
                slab_ref[t * cin:(t + 1) * cin, i * lpad:(i + 1) * lpad] = (
                    x_ref[i, :, s:s + lpad])
        # One MXU matmul: (TCout, K) @ (K, NB*Lpad), f32 accumulate.
        y = jnp.dot(w_ref[...], slab_ref[...], preferred_element_type=jnp.float32)
        y = y + shift_ref[...]                                # folded BatchNorm shift
        y = y * jax.nn.sigmoid(y)                             # SiLU
        for i in range(nb):                                   # 128-aligned lane slices
            o_ref[i] = y[:, i * lpad:(i + 1) * lpad].astype(o_ref.dtype)

    return kernel


def _fused_conv_bn_silu(x_flat, w_k, shift, *, tap_starts, lpad, nb, tco):
    """x_flat: (N, Cin, P) bf16; w_k: (Cout, KH*KW*Cin) bf16 (scale folded);
    shift: (Cout, 1) f32  ->  (N, Cout, Lpad) f32 (NCHW-ordered lanes)."""
    n, cin, p = x_flat.shape
    cout, ktot = w_k.shape
    kernel = _make_kernel(tuple(tap_starts), int(cin), int(lpad), int(nb))
    return pl.pallas_call(
        kernel,
        out_shape=jax.ShapeDtypeStruct((n, cout, lpad), jnp.float32),
        grid_spec=pltpu.PrefetchScalarGridSpec(
            num_scalar_prefetch=0,
            grid=(n // nb, cout // tco),
            in_specs=[
                pl.BlockSpec((nb, cin, p), lambda b, c: (b, 0, 0)),
                pl.BlockSpec((tco, ktot), lambda b, c: (c, 0)),
                pl.BlockSpec((tco, 1), lambda b, c: (c, 0)),
            ],
            out_specs=pl.BlockSpec((nb, tco, lpad), lambda b, c: (b, c, 0)),
            scratch_shapes=[pltpu.VMEM((ktot, nb * lpad), jnp.bfloat16)],
        ),
        compiler_params=pltpu.CompilerParams(
            dimension_semantics=("parallel", "parallel"),
            vmem_limit_bytes=_vmem_limit_bytes(),
        ),
    )(x_flat, w_k, shift)


# ----------------------------------------------------------------------------
# Wrapper reproducing Conv.forward: act(bn(conv(x))), NCHW in / NCHW out
# ----------------------------------------------------------------------------
@functools.partial(jax.jit, static_argnames=("kernel_size", "stride", "padding"))
def conv_forward(x_nchw, weight, gamma, beta, running_mean, running_var,
                 *, kernel_size, stride, padding, eps=1e-5):
    """x_nchw: (N, Cin, H, W); weight: (Cout, Cin, KH, KW) (PyTorch layouts)."""
    del kernel_size  # implied by weight.shape
    N, Cin, H, W = x_nchw.shape
    Cout, Cin_w, KH, KW = weight.shape
    assert Cin_w == Cin  # groups=1 only (see module-level TODO)
    sh, sw = _pair(stride)
    ph, pw = _pair(padding)

    Hp, Wp = H + 2 * ph, W + 2 * pw
    Ho = (Hp - KH) // sh + 1
    Wo = (Wp - KW) // sw + 1

    L = Ho * sh * Wp                               # valid lane span per image
    Lpad = _round_up(L, 128)                       # lane-dense (unmasked vst) output width
    tap_starts = tuple(kh * Wp + kw for kh in range(KH) for kw in range(KW))
    Ktot = KH * KW * Cin

    # Per-image flat slab (channels on sublanes, flat (H,W) on lanes), sized so every
    # Lpad-wide tap slice stays in-bounds.  ONE bf16 pad (cast before padding).
    need = max(Hp * Wp, max(tap_starts) + Lpad)
    Hp_ext = -(-need // Wp)                        # ceil(need / Wp)
    P = Hp_ext * Wp
    x_flat = jnp.pad(
        x_nchw.astype(jnp.bfloat16),
        ((0, 0), (0, 0), (ph, Hp_ext - H - ph), (pw, pw)),
    ).reshape(N, Cin, P)

    # Fold eval-mode BatchNorm: scale into the weights (f32, then bf16); shift stays f32.
    scale = (gamma / jnp.sqrt(running_var + eps)).astype(jnp.float32)
    shift = beta.astype(jnp.float32) - running_mean.astype(jnp.float32) * scale
    # weight (Cout, Cin, KH, KW) -> (Cout, KH, KW, Cin) -> (Cout, KH*KW*Cin), K=(kh,kw,cin).
    w_k = jnp.transpose(weight.astype(jnp.float32), (0, 2, 3, 1)).reshape(Cout, Ktot)
    w_k = (w_k * scale[:, None]).astype(jnp.bfloat16)

    tco = _pick_cout_tile(Cout)
    nb = _pick_batch_block(N, Cin, P, tco, Lpad, Ktot, _vmem_limit_bytes())

    out_flat = _fused_conv_bn_silu(
        x_flat, w_k, shift.reshape(Cout, 1),
        tap_starts=tap_starts, lpad=Lpad, nb=nb, tco=tco)      # (N, Cout, Lpad) f32

    # (N, Cout, Lpad) -> (N, Cout, Ho, Wo): drop lane padding / stride / right-edge junk.
    out = out_flat[:, :, :L].reshape(N, Cout, Ho, sh, Wp)[:, :, :, 0, :]
    out = out[:, :, :, : (Wo - 1) * sw + 1 : sw]
    return out


# ----------------------------------------------------------------------------
# Pure-JAX reference (for correctness check)
# ----------------------------------------------------------------------------
def conv_forward_ref(x_nchw, weight, gamma, beta, running_mean, running_var,
                     *, kernel_size, stride, padding, eps=1e-5):
    y = lax.conv_general_dilated(
        x_nchw.astype(jnp.float32), weight.astype(jnp.float32),
        window_strides=(stride, stride),
        padding=[(padding, padding), (padding, padding)],
        dimension_numbers=("NCHW", "OIHW", "NCHW"))
    scale = (gamma / jnp.sqrt(running_var + eps)).reshape(1, -1, 1, 1)
    shift = (beta - running_mean * gamma / jnp.sqrt(running_var + eps)).reshape(1, -1, 1, 1)
    y = y * scale + shift
    return y * jax.nn.sigmoid(y)


if __name__ == "__main__":
    # Module config: Conv(in_channels=4, out_channels=8, kernel_size=3, stride=1)
    in_channels, out_channels, kernel_size, stride = 4, 8, 3, 1
    padding = autopad(kernel_size, None)   # -> 1

    key = jax.random.PRNGKey(0)
    kx, kw, kg, kb, km, kv = jax.random.split(key, 6)

    x = jax.random.normal(kx, (2, in_channels, 16, 16), dtype=jnp.float32)

    # Deterministic synthetic parameters (shapes from nn.Conv2d / nn.BatchNorm2d).
    weight = 0.1 * jax.random.normal(
        kw, (out_channels, in_channels, kernel_size, kernel_size), dtype=jnp.float32)
    gamma = 1.0 + 0.1 * jax.random.normal(kg, (out_channels,), dtype=jnp.float32)
    beta = 0.1 * jax.random.normal(kb, (out_channels,), dtype=jnp.float32)
    running_mean = 0.1 * jax.random.normal(km, (out_channels,), dtype=jnp.float32)
    running_var = jnp.abs(1.0 + 0.1 * jax.random.normal(kv, (out_channels,),
                                                        dtype=jnp.float32))

    out = conv_forward(x, weight, gamma, beta, running_mean, running_var,
                       kernel_size=kernel_size, stride=stride, padding=padding)
    out = jax.block_until_ready(out)

    ref = conv_forward_ref(x, weight, gamma, beta, running_mean, running_var,
                           kernel_size=kernel_size, stride=stride, padding=padding)
    assert out.shape == (2, out_channels, 16, 16)
    # bf16 operands (BN scale folded into bf16 weights) with f32 accumulation.
    assert jnp.allclose(out, ref, atol=3e-2, rtol=3e-2), float(jnp.max(jnp.abs(out - ref)))

    print("KERNEL_OK")
</pallas_src>

<mosaic_0001>
module attributes {stable_mosaic.version = 11 : i64} {
  func.func @kernel(%arg0: i32, %arg1: i32, %arg2: memref<2x4x432xbf16, #tpu.memory_space<vmem>>, %arg3: memref<8x36xbf16, #tpu.memory_space<vmem>>, %arg4: memref<8x1xf32, #tpu.memory_space<vmem>>, %arg5: memref<2x8x384xf32, #tpu.memory_space<vmem>>, %arg6: memref<36x768xbf16, #tpu.memory_space<vmem>>) attributes {dimension_semantics = [#tpu.dimension_semantics<parallel>, #tpu.dimension_semantics<parallel>], iteration_bounds = array<i64: 1, 1>, scalar_prefetch = 0 : i64, scratch_operands = 1 : i64, tpu.core_type = #tpu.core_type<tc>, window_params = [{transform_indices = @transform_0, window_bounds = array<i64: 2, 4, 432>}, {transform_indices = @transform_1, window_bounds = array<i64: 8, 36>}, {transform_indices = @transform_2, window_bounds = array<i64: 8, 1>}, {transform_indices = @transform_3, window_bounds = array<i64: 2, 8, 384>}]} {
    %c0 = arith.constant 0 : index
    %c0_0 = arith.constant 0 : index
    %c0_1 = arith.constant 0 : index
    %0 = vector.load %arg2[%c0, %c0_0, %c0_1] : memref<2x4x432xbf16, #tpu.memory_space<vmem>>, vector<1x4x384xbf16>
    %1 = vector.shape_cast %0 : vector<1x4x384xbf16> to vector<4x384xbf16>
    %c0_2 = arith.constant 0 : index
    %c0_3 = arith.constant 0 : index
    %2 = vector.load %arg6[%c0_2, %c0_3] : memref<36x768xbf16, #tpu.memory_space<vmem>>, vector<4x384xbf16>
    tpu.vector_store %arg6[%c0_2, %c0_3], %1 {strides = array<i32>} : memref<36x768xbf16, #tpu.memory_space<vmem>>, vector<4x384xbf16>,
    %c0_4 = arith.constant 0 : index
    %c0_5 = arith.constant 0 : index
    %c1 = arith.constant 1 : index
    %3 = vector.load %arg2[%c0_4, %c0_5, %c1] : memref<2x4x432xbf16, #tpu.memory_space<vmem>>, vector<1x4x384xbf16>
    %4 = vector.shape_cast %3 : vector<1x4x384xbf16> to vector<4x384xbf16>
    %c4 = arith.constant 4 : index
    %c0_6 = arith.constant 0 : index
    %5 = vector.load %arg6[%c4, %c0_6] : memref<36x768xbf16, #tpu.memory_space<vmem>>, vector<4x384xbf16>
    tpu.vector_store %arg6[%c4, %c0_6], %4 {strides = array<i32>} : memref<36x768xbf16, #tpu.memory_space<vmem>>, vector<4x384xbf16>,
    %c0_7 = arith.constant 0 : index
    %c0_8 = arith.constant 0 : index
    %c2 = arith.constant 2 : index
    %6 = vector.load %arg2[%c0_7, %c0_8, %c2] : memref<2x4x432xbf16, #tpu.memory_space<vmem>>, vector<1x4x384xbf16>
    %7 = vector.shape_cast %6 : vector<1x4x384xbf16> to vector<4x384xbf16>
    %c8 = arith.constant 8 : index
    %c0_9 = arith.constant 0 : index
    %8 = vector.load %arg6[%c8, %c0_9] : memref<36x768xbf16, #tpu.memory_space<vmem>>, vector<4x384xbf16>
    tpu.vector_store %arg6[%c8, %c0_9], %7 {strides = array<i32>} : memref<36x768xbf16, #tpu.memory_space<vmem>>, vector<4x384xbf16>,
    %c0_10 = arith.constant 0 : index
    %c0_11 = arith.constant 0 : index
    %c18 = arith.constant 18 : index
    %9 = vector.load %arg2[%c0_10, %c0_11, %c18] : memref<2x4x432xbf16, #tpu.memory_space<vmem>>, vector<1x4x384xbf16>
    %10 = vector.shape_cast %9 : vector<1x4x384xbf16> to vector<4x384xbf16>
    %c12 = arith.constant 12 : index
    %c0_12 = arith.constant 0 : index
    %11 = vector.load %arg6[%c12, %c0_12] : memref<36x768xbf16, #tpu.memory_space<vmem>>, vector<4x384xbf16>
    tpu.vector_store %arg6[%c12, %c0_12], %10 {strides = array<i32>} : memref<36x768xbf16, #tpu.memory_space<vmem>>, vector<4x384xbf16>,
    %c0_13 = arith.constant 0 : index
    %c0_14 = arith.constant 0 : index
    %c19 = arith.constant 19 : index
    %12 = vector.load %arg2[%c0_13, %c0_14, %c19] : memref<2x4x432xbf16, #tpu.memory_space<vmem>>, vector<1x4x384xbf16>
    %13 = vector.shape_cast %12 : vector<1x4x384xbf16> to vector<4x384xbf16>
    %c16 = arith.constant 16 : index
    %c0_15 = arith.constant 0 : index
    %14 = vector.load %arg6[%c16, %c0_15] : memref<36x768xbf16, #tpu.memory_space<vmem>>, vector<4x384xbf16>
    tpu.vector_store %arg6[%c16, %c0_15], %13 {strides = array<i32>} : memref<36x768xbf16, #tpu.memory_space<vmem>>, vector<4x384xbf16>,
    %c0_16 = arith.constant 0 : index
    %c0_17 = arith.constant 0 : index
    %c20 = arith.constant 20 : index
    %15 = vector.load %arg2[%c0_16, %c0_17, %c20] : memref<2x4x432xbf16, #tpu.memory_space<vmem>>, vector<1x4x384xbf16>
    %16 = vector.shape_cast %15 : vector<1x4x384xbf16> to vector<4x384xbf16>
    %c20_18 = arith.constant 20 : index
    %c0_19 = arith.constant 0 : index
    %17 = vector.load %arg6[%c20_18, %c0_19] : memref<36x768xbf16, #tpu.memory_space<vmem>>, vector<4x384xbf16>
    tpu.vector_store %arg6[%c20_18, %c0_19], %16 {strides = array<i32>} : memref<36x768xbf16, #tpu.memory_space<vmem>>, vector<4x384xbf16>,
    %c0_20 = arith.constant 0 : index
    %c0_21 = arith.constant 0 : index
    %c36 = arith.constant 36 : index
    %18 = vector.load %arg2[%c0_20, %c0_21, %c36] : memref<2x4x432xbf16, #tpu.memory_space<vmem>>, vector<1x4x384xbf16>
    %19 = vector.shape_cast %18 : vector<1x4x384xbf16> to vector<4x384xbf16>
    %c24 = arith.constant 24 : index
    %c0_22 = arith.constant 0 : index
    %20 = vector.load %arg6[%c24, %c0_22] : memref<36x768xbf16, #tpu.memory_space<vmem>>, vector<4x384xbf16>
    tpu.vector_store %arg6[%c24, %c0_22], %19 {strides = array<i32>} : memref<36x768xbf16, #tpu.memory_space<vmem>>, vector<4x384xbf16>,
    %c0_23 = arith.constant 0 : index
    %c0_24 = arith.constant 0 : index
    %c37 = arith.constant 37 : index
    %21 = vector.load %arg2[%c0_23, %c0_24, %c37] : memref<2x4x432xbf16, #tpu.memory_space<vmem>>, vector<1x4x384xbf16>
    %22 = vector.shape_cast %21 : vector<1x4x384xbf16> to vector<4x384xbf16>
    %c28 = arith.constant 28 : index
    %c0_25 = arith.constant 0 : index
    %23 = vector.load %arg6[%c28, %c0_25] : memref<36x768xbf16, #tpu.memory_space<vmem>>, vector<4x384xbf16>
    tpu.vector_store %arg6[%c28, %c0_25], %22 {strides = array<i32>} : memref<36x768xbf16, #tpu.memory_space<vmem>>, vector<4x384xbf16>,
    %c0_26 = arith.constant 0 : index
    %c0_27 = arith.constant 0 : index
    %c38 = arith.constant 38 : index
    %24 = vector.load %arg2[%c0_26, %c0_27, %c38] : memref<2x4x432xbf16, #tpu.memory_space<vmem>>, vector<1x4x384xbf16>
    %25 = vector.shape_cast %24 : vector<1x4x384xbf16> to vector<4x384xbf16>
    %c32 = arith.constant 32 : index
    %c0_28 = arith.constant 0 : index
    %26 = vector.load %arg6[%c32, %c0_28] : memref<36x768xbf16, #tpu.memory_space<vmem>>, vector<4x384xbf16>
    tpu.vector_store %arg6[%c32, %c0_28], %25 {strides = array<i32>} : memref<36x768xbf16, #tpu.memory_space<vmem>>, vector<4x384xbf16>,
    %c1_29 = arith.constant 1 : index
    %c0_30 = arith.constant 0 : index
    %c0_31 = arith.constant 0 : index
    %27 = vector.load %arg2[%c1_29, %c0_30, %c0_31] : memref<2x4x432xbf16, #tpu.memory_space<vmem>>, vector<1x4x384xbf16>
    %28 = vector.shape_cast %27 : vector<1x4x384xbf16> to vector<4x384xbf16>
    %c0_32 = arith.constant 0 : index
    %c384 = arith.constant 384 : index
    %29 = vector.load %arg6[%c0_32, %c384] : memref<36x768xbf16, #tpu.memory_space<vmem>>, vector<4x384xbf16>
    tpu.vector_store %arg6[%c0_32, %c384], %28 {strides = array<i32>} : memref<36x768xbf16, #tpu.memory_space<vmem>>, vector<4x384xbf16>,
    %c1_33 = arith.constant 1 : index
    %c0_34 = arith.constant 0 : index
    %c1_35 = arith.constant 1 : index
    %30 = vector.load %arg2[%c1_33, %c0_34, %c1_35] : memref<2x4x432xbf16, #tpu.memory_space<vmem>>, vector<1x4x384xbf16>
    %31 = vector.shape_cast %30 : vector<1x4x384xbf16> to vector<4x384xbf16>
    %c4_36 = arith.constant 4 : index
    %c384_37 = arith.constant 384 : index
    %32 = vector.load %arg6[%c4_36, %c384_37] : memref<36x768xbf16, #tpu.memory_space<vmem>>, vector<4x384xbf16>
    tpu.vector_store %arg6[%c4_36, %c384_37], %31 {strides = array<i32>} : memref<36x768xbf16, #tpu.memory_space<vmem>>, vector<4x384xbf16>,
    %c1_38 = arith.constant 1 : index
    %c0_39 = arith.constant 0 : index
    %c2_40 = arith.constant 2 : index
    %33 = vector.load %arg2[%c1_38, %c0_39, %c2_40] : memref<2x4x432xbf16, #tpu.memory_space<vmem>>, vector<1x4x384xbf16>
    %34 = vector.shape_cast %33 : vector<1x4x384xbf16> to vector<4x384xbf16>
    %c8_41 = arith.constant 8 : index
    %c384_42 = arith.constant 384 : index
    %35 = vector.load %arg6[%c8_41, %c384_42] : memref<36x768xbf16, #tpu.memory_space<vmem>>, vector<4x384xbf16>
    tpu.vector_store %arg6[%c8_41, %c384_42], %34 {strides = array<i32>} : memref<36x768xbf16, #tpu.memory_space<vmem>>, vector<4x384xbf16>,
    %c1_43 = arith.constant 1 : index
    %c0_44 = arith.constant 0 : index
    %c18_45 = arith.constant 18 : index
    %36 = vector.load %arg2[%c1_43, %c0_44, %c18_45] : memref<2x4x432xbf16, #tpu.memory_space<vmem>>, vector<1x4x384xbf16>
    %37 = vector.shape_cast %36 : vector<1x4x384xbf16> to vector<4x384xbf16>
    %c12_46 = arith.constant 12 : index
    %c384_47 = arith.constant 384 : index
    %38 = vector.load %arg6[%c12_46, %c384_47] : memref<36x768xbf16, #tpu.memory_space<vmem>>, vector<4x384xbf16>
    tpu.vector_store %arg6[%c12_46, %c384_47], %37 {strides = array<i32>} : memref<36x768xbf16, #tpu.memory_space<vmem>>, vector<4x384xbf16>,
    %c1_48 = arith.constant 1 : index
    %c0_49 = arith.constant 0 : index
    %c19_50 = arith.constant 19 : index
    %39 = vector.load %arg2[%c1_48, %c0_49, %c19_50] : memref<2x4x432xbf16, #tpu.memory_space<vmem>>, vector<1x4x384xbf16>
    %40 = vector.shape_cast %39 : vector<1x4x384xbf16> to vector<4x384xbf16>
    %c16_51 = arith.constant 16 : index
    %c384_52 = arith.constant 384 : index
    %41 = vector.load %arg6[%c16_51, %c384_52] : memref<36x768xbf16, #tpu.memory_space<vmem>>, vector<4x384xbf16>
    tpu.vector_store %arg6[%c16_51, %c384_52], %40 {strides = array<i32>} : memref<36x768xbf16, #tpu.memory_space<vmem>>, vector<4x384xbf16>,
    %c1_53 = arith.constant 1 : index
    %c0_54 = arith.constant 0 : index
    %c20_55 = arith.constant 20 : index
    %42 = vector.load %arg2[%c1_53, %c0_54, %c20_55] : memref<2x4x432xbf16, #tpu.memory_space<vmem>>, vector<1x4x384xbf16>
    %43 = vector.shape_cast %42 : vector<1x4x384xbf16> to vector<4x384xbf16>
    %c20_56 = arith.constant 20 : index
    %c384_57 = arith.constant 384 : index
    %44 = vector.load %arg6[%c20_56, %c384_57] : memref<36x768xbf16, #tpu.memory_space<vmem>>, vector<4x384xbf16>
    tpu.vector_store %arg6[%c20_56, %c384_57], %43 {strides = array<i32>} : memref<36x768xbf16, #tpu.memory_space<vmem>>, vector<4x384xbf16>,
    %c1_58 = arith.constant 1 : index
    %c0_59 = arith.constant 0 : index
    %c36_60 = arith.constant 36 : index
    %45 = vector.load %arg2[%c1_58, %c0_59, %c36_60] : memref<2x4x432xbf16, #tpu.memory_space<vmem>>, vector<1x4x384xbf16>
    %46 = vector.shape_cast %45 : vector<1x4x384xbf16> to vector<4x384xbf16>
    %c24_61 = arith.constant 24 : index
    %c384_62 = arith.constant 384 : index
    %47 = vector.load %arg6[%c24_61, %c384_62] : memref<36x768xbf16, #tpu.memory_space<vmem>>, vector<4x384xbf16>
    tpu.vector_store %arg6[%c24_61, %c384_62], %46 {strides = array<i32>} : memref<36x768xbf16, #tpu.memory_space<vmem>>, vector<4x384xbf16>,
    %c1_63 = arith.constant 1 : index
    %c0_64 = arith.constant 0 : index
    %c37_65 = arith.constant 37 : index
    %48 = vector.load %arg2[%c1_63, %c0_64, %c37_65] : memref<2x4x432xbf16, #tpu.memory_space<vmem>>, vector<1x4x384xbf16>
    %49 = vector.shape_cast %48 : vector<1x4x384xbf16> to vector<4x384xbf16>
    %c28_66 = arith.constant 28 : index
    %c384_67 = arith.constant 384 : index
    %50 = vector.load %arg6[%c28_66, %c384_67] : memref<36x768xbf16, #tpu.memory_space<vmem>>, vector<4x384xbf16>
    tpu.vector_store %arg6[%c28_66, %c384_67], %49 {strides = array<i32>} : memref<36x768xbf16, #tpu.memory_space<vmem>>, vector<4x384xbf16>,
    %c1_68 = arith.constant 1 : index
    %c0_69 = arith.constant 0 : index
    %c38_70 = arith.constant 38 : index
    %51 = vector.load %arg2[%c1_68, %c0_69, %c38_70] : memref<2x4x432xbf16, #tpu.memory_space<vmem>>, vector<1x4x384xbf16>
    %52 = vector.shape_cast %51 : vector<1x4x384xbf16> to vector<4x384xbf16>
    %c32_71 = arith.constant 32 : index
    %c384_72 = arith.constant 384 : index
    %53 = vector.load %arg6[%c32_71, %c384_72] : memref<36x768xbf16, #tpu.memory_space<vmem>>, vector<4x384xbf16>
    tpu.vector_store %arg6[%c32_71, %c384_72], %52 {strides = array<i32>} : memref<36x768xbf16, #tpu.memory_space<vmem>>, vector<4x384xbf16>,
    %c0_73 = arith.constant 0 : index
    %c0_74 = arith.constant 0 : index
    %54 = vector.load %arg3[%c0_73, %c0_74] : memref<8x36xbf16, #tpu.memory_space<vmem>>, vector<8x36xbf16>
    %c0_75 = arith.constant 0 : index
    %c0_76 = arith.constant 0 : index
    %55 = vector.load %arg6[%c0_75, %c0_76] : memref<36x768xbf16, #tpu.memory_space<vmem>>, vector<36x768xbf16>
    %cst = arith.constant dense<0.000000e+00> : vector<8x768xf32>
    %56 = tpu.matmul %54, %55, %cst {dimension_numbers = #tpu.dot_dimension_numbers<[1], [0], [0], [1], [0, 0, 1, 1], [], []>} : vector<8x36xbf16>, vector<36x768xbf16>, vector<8x768xf32> -> vector<8x768xf32>
    %c0_77 = arith.constant 0 : index
    %c0_78 = arith.constant 0 : index
    %57 = vector.load %arg4[%c0_77, %c0_78] : memref<8x1xf32, #tpu.memory_space<vmem>>, vector<8x1xf32>
    %58 = vector.broadcast %57 : vector<8x1xf32> to vector<8x768xf32>
    %59 = arith.addf %56, %58 : vector<8x768xf32>
    %60 = arith.negf %59 : vector<8x768xf32>
    %61 = math.exp %60 : vector<8x768xf32>
    %cst_79 = arith.constant 1.000000e+00 : f32
    %62 = vector.broadcast %cst_79 : f32 to vector<8x768xf32>
    %63 = arith.addf %62, %61 : vector<8x768xf32>
    %64 = arith.divf %62, %63 : vector<8x768xf32>
    %65 = arith.mulf %59, %64 : vector<8x768xf32>
    %66 = vector.extract_strided_slice %65 {offsets = [0, 0], sizes = [8, 384], strides = [1, 1]} : vector<8x768xf32> to vector<8x384xf32>
    %c0_80 = arith.constant 0 : index
    %c0_81 = arith.constant 0 : index
    %c0_82 = arith.constant 0 : index
    %67 = vector.load %arg5[%c0_80, %c0_81, %c0_82] : memref<2x8x384xf32, #tpu.memory_space<vmem>>, vector<1x8x384xf32>
    %68 = vector.shape_cast %67 : vector<1x8x384xf32> to vector<8x384xf32>
    %69 = vector.shape_cast %66 : vector<8x384xf32> to vector<1x8x384xf32>
    tpu.vector_store %arg5[%c0_80, %c0_81, %c0_82], %69 {strides = array<i32>} : memref<2x8x384xf32, #tpu.memory_space<vmem>>, vector<1x8x384xf32>,
    %70 = vector.extract_strided_slice %65 {offsets = [0, 384], sizes = [8, 384], strides = [1, 1]} : vector<8x768xf32> to vector<8x384xf32>
    %c1_83 = arith.constant 1 : index
    %c0_84 = arith.constant 0 : index
    %c0_85 = arith.constant 0 : index
    %71 = vector.load %arg5[%c1_83, %c0_84, %c0_85] : memref<2x8x384xf32, #tpu.memory_space<vmem>>, vector<1x8x384xf32>
    %72 = vector.shape_cast %71 : vector<1x8x384xf32> to vector<8x384xf32>
    %73 = vector.shape_cast %70 : vector<8x384xf32> to vector<1x8x384xf32>
    tpu.vector_store %arg5[%c1_83, %c0_84, %c0_85], %73 {strides = array<i32>} : memref<2x8x384xf32, #tpu.memory_space<vmem>>, vector<1x8x384xf32>,
    return
  }
  func.func @transform_0(%arg0: i32, %arg1: i32) -> (i32, i32, i32) {
    %c0_i32 = arith.constant 0 : i32
    %c0_i32_0 = arith.constant 0 : i32
    %c0_i32_1 = arith.constant 0 : i32
    return %arg0, %c0_i32, %c0_i32_0 : i32, i32, i32
  }
  func.func @transform_1(%arg0: i32, %arg1: i32) -> (i32, i32) {
    %c0_i32 = arith.constant 0 : i32
    %c0_i32_0 = arith.constant 0 : i32
    return %arg1, %c0_i32 : i32, i32
  }
  func.func @transform_2(%arg0: i32, %arg1: i32) -> (i32, i32) {
    %c0_i32 = arith.constant 0 : i32
    %c0_i32_0 = arith.constant 0 : i32
    return %arg1, %c0_i32 : i32, i32
  }
  func.func @transform_3(%arg0: i32, %arg1: i32) -> (i32, i32, i32) {
    %c0_i32 = arith.constant 0 : i32
    %c0_i32_0 = arith.constant 0 : i32
    return %arg0, %arg1, %c0_i32 : i32, i32, i32
  }
}

</mosaic_0001>

<llo_original>
// kernel: conv_forward.1
$region0: #{conv_forward.1}
  #allocation0 [shape = 'u32[]', space=smem, size = 0x4, offset = 0x4, fixed_abs, tag = 'smem constant byte address 0x4 - core index']
  #allocation1 [shape = 'u32[144,128]{1,0:T(1,128)}', space=vmem, size = 0x12000, scoped, tag = 'internal scratch']
  #allocation2 [shape = 'bf16[36,768]{1,0:T(8,128)(2,1)}', space=vmem, size = 0xf000, scoped, tag = 'scratch operand']
  %s0 = inlined_call_operand.vmem [shape: bf16[2,4,432], index: 0, kind: input, shape index: {}]
  %s1 = inlined_call_operand.vmem [shape: bf16[8,36], index: 1, kind: input, shape index: {}]
  %s2 = inlined_call_operand.vmem [shape: f32[8,1], index: 2, kind: input, shape index: {}]
  %s3 = inlined_call_operand.vmem [shape: f32[2,8,384], index: 3, kind: output, shape index: {}]
  %s4 = sld [smem:[#allocation0]]
  $region22: #{conv_forward.1} parent=0
    _
  %s6 = ssub.s32 1, %s4
  %s7 = scalar_select 0, %s6, %s4
  // Predicated region
  $region2: #{conv_forward.1} parent=0 // pred_check
    _
  $region3: #{conv_forward.1} parent=0 // pred_check_branch
    %9 = sbr.rel (0) target = $region5
  $region4: #{conv_forward.1} parent=0 // pred_region
    _
  $region5: #{conv_forward.1} parent=0 // pred_fallthru
    _
  // Predicated region
  $region6: #{conv_forward.1} parent=0 // pred_check
    _
  $region7: #{conv_forward.1} parent=0 // pred_check_branch
    %11 = sbr.rel (0) target = $region9
  $region8: #{conv_forward.1} parent=0 // pred_region
    _
  $region9: #{conv_forward.1} parent=0 // pred_fallthru
    _
  // Predicated region
  $region10: #{conv_forward.1} parent=0 // pred_check
    _
  $region11: #{conv_forward.1} parent=0 // pred_check_branch
    %13 = sbr.rel (0) target = $region13
  $region12: #{conv_forward.1} parent=0 // pred_region
    _
  $region13: #{conv_forward.1} parent=0 // pred_fallthru
    _
  %v15 = vld [vmem:[%s0] sm:$0x3f]
  %v17 = vcombine.high %v15, %v15
  %v19 = vunpack.c.l.s4 1983009808
  %v20 = vunpack.c.0.s8 %v19
  %v21 = vlaneseq
  %v22 = vshrl.u32 %v21, 7
  %v23 = vsub.s32 %v20, %v22
  %v24 = vrot.slane %v15, %v23
  %v26 = vunpack.c.l.s4 1983009808
  %v27 = vunpack.c.0.s8 %v26
  %v28 = vlaneseq
  %v29 = vshrl.u32 %v28, 7
  %v30 = vsub.s32 %v27, %v29
  %v31 = vrot.slane %v17, %v30
  %34 = vst [vmem:[#allocation2] sm:$0x33] %v24
  %35 = vst [vmem:[#allocation2 + $0x8] sm:$0x3] %v31
  %v36 = vld [vmem:[%s0] sm:$0xff]
  %v38 = vcombine.low %v36, %v36
  %v40 = vunpack.c.l.s4 1983009808
  %v41 = vunpack.c.0.s8 %v40
  %v42 = vlaneseq
  %v43 = vshrl.u32 %v42, 7
  %v44 = vsub.s32 %v41, %v43
  %v45 = vrot.slane %v38, %v44
  %v47 = vunpack.c.l.s4 1983009808
  %v48 = vunpack.c.0.s8 %v47
  %v49 = vlaneseq
  %v50 = vshrl.u32 %v49, 7
  %v51 = vsub.s32 %v48, %v50
  %v52 = vrot.slane %v36, %v51
  %53 = vrot.lane.b32.xlu0 %v45, 127
  %v54 = vpop.permute.xlu0 %53
  %55 = vrot.lane.b32.xlu0 %v52, 127
  %v56 = vpop.permute.xlu0 %55
  %v57 = vrot.slane %v54, 4
  %v58 = vrot.slane %v56, 4
  %vm59 = vcmask 1043456
  %v60 = vsel %vm59, %v57, %v58
  %vm61 = vcmask 1039360
  %v62 = vsel %vm61, %v54, %v60
  %v63 = vsel %vm61, %v56, %v58
  %66 = vst [vmem:[#allocation2] sm:$0xcc] %v62
  %67 = vst [vmem:[#allocation2 + $0x8] sm:$0xc] %v63
  %v68 = vld [vmem:[%s0] sm:$0xff]
  %v70 = vcombine.high %v68, %v68
  %v72 = vunpack.c.l.s4 1983009808
  %v73 = vunpack.c.0.s8 %v72
  %v74 = vlaneseq
  %v75 = vshrl.u32 %v74, 7
  %v76 = vsub.s32 %v73, %v75
  %v77 = vrot.slane %v68, %v76
  %v79 = vunpack.c.l.s4 1983009808
  %v80 = vunpack.c.0.s8 %v79
  %v81 = vlaneseq
  %v82 = vshrl.u32 %v81, 7
  %v83 = vsub.s32 %v80, %v82
  %v84 = vrot.slane %v70, %v83
  %85 = vrot.lane.b32.xlu0 %v77, 126
  %v86 = vpop.permute.xlu0 %85
  %87 = vrot.lane.b32.xlu0 %v84, 126
  %v88 = vpop.permute.xlu0 %87
  %v89 = vrot.slane %v86, 4
  %v90 = vrot.slane %v88, 4
  %v91 = vsel %vm59, %v89, %v90
  %vm92 = vcmask 1031168
  %v93 = vsel %vm92, %v86, %v91
  %v94 = vsel %vm92, %v88, %v90
  %97 = vst [vmem:[#allocation2 + $0x18] sm:$0x33] %v93
  %98 = vst [vmem:[#allocation2 + $0x20] sm:$0x3] %v94
  %v99 = vld [vmem:[%s0] sm:$0xff]
  %v101 = vcombine.low %v99, %v99
  %v103 = vunpack.c.l.s4 1983009808
  %v104 = vunpack.c.0.s8 %v103
  %v105 = vlaneseq
  %v106 = vshrl.u32 %v105, 7
  %v107 = vsub.s32 %v104, %v106
  %v108 = vrot.slane %v101, %v107
  %v110 = vunpack.c.l.s4 1983009808
  %v111 = vunpack.c.0.s8 %v110
  %v112 = vlaneseq
  %v113 = vshrl.u32 %v112, 7
  %v114 = vsub.s32 %v111, %v113
  %v115 = vrot.slane %v99, %v114
  %116 = vrot.lane.b32.xlu0 %v108, 110
  %v117 = vpop.permute.xlu0 %116
  %118 = vrot.lane.b32.xlu0 %v115, 110
  %v119 = vpop.permute.xlu0 %118
  %v120 = vrot.slane %v117, 4
  %v121 = vrot.slane %v119, 4
  %v122 = vsel %vm59, %v120, %v121
  %vm123 = vcmask 900096
  %v124 = vsel %vm123, %v117, %v122
  %v125 = vsel %vm123, %v119, %v121
  %128 = vst [vmem:[#allocation2 + $0x18] sm:$0xcc] %v124
  %129 = vst [vmem:[#allocation2 + $0x20] sm:$0xc] %v125
  %v130 = vld [vmem:[%s0] sm:$0xff]
  %v132 = vcombine.high %v130, %v130
  %v134 = vunpack.c.l.s4 1983009808
  %v135 = vunpack.c.0.s8 %v134
  %v136 = vlaneseq
  %v137 = vshrl.u32 %v136, 7
  %v138 = vsub.s32 %v135, %v137
  %v139 = vrot.slane %v130, %v138
  %v141 = vunpack.c.l.s4 1983009808
  %v142 = vunpack.c.0.s8 %v141
  %v143 = vlaneseq
  %v144 = vshrl.u32 %v143, 7
  %v145 = vsub.s32 %v142, %v144
  %v146 = vrot.slane %v132, %v145
  %147 = vrot.lane.b32.xlu0 %v139, 109
  %v148 = vpop.permute.xlu0 %147
  %149 = vrot.lane.b32.xlu0 %v146, 109
  %v150 = vpop.permute.xlu0 %149
  %v151 = vrot.slane %v148, 4
  %v152 = vrot.slane %v150, 4
  %v153 = vsel %vm59, %v151, %v152
  %vm154 = vcmask 891904
  %v155 = vsel %vm154, %v148, %v153
  %v156 = vsel %vm154, %v150, %v152
  %159 = vst [vmem:[#allocation2 + $0x30] sm:$0x33] %v155
  %160 = vst [vmem:[#allocation2 + $0x38] sm:$0x3] %v156
  %v161 = vld [vmem:[%s0] sm:$0xff]
  %v163 = vcombine.low %v161, %v161
  %v165 = vunpack.c.l.s4 1983009808
  %v166 = vunpack.c.0.s8 %v165
  %v167 = vlaneseq
  %v168 = vshrl.u32 %v167, 7
  %v169 = vsub.s32 %v166, %v168
  %v170 = vrot.slane %v163, %v169
  %v172 = vunpack.c.l.s4 1983009808
  %v173 = vunpack.c.0.s8 %v172
  %v174 = vlaneseq
  %v175 = vshrl.u32 %v174, 7
  %v176 = vsub.s32 %v173, %v175
  %v177 = vrot.slane %v161, %v176
  %178 = vrot.lane.b32.xlu0 %v170, 108
  %v179 = vpop.permute.xlu0 %178
  %180 = vrot.lane.b32.xlu0 %v177, 108
  %v181 = vpop.permute.xlu0 %180
  %v182 = vrot.slane %v179, 4
  %v183 = vrot.slane %v181, 4
  %v184 = vsel %vm59, %v182, %v183
  %vm185 = vcmask 883712
  %v186 = vsel %vm185, %v179, %v184
  %v187 = vsel %vm185, %v181, %v183
  %190 = vst [vmem:[#allocation2 + $0x30] sm:$0xcc] %v186
  %191 = vst [vmem:[#allocation2 + $0x38] sm:$0xc] %v187
  %v192 = vld [vmem:[%s0] sm:$0xff]
  %v194 = vcombine.high %v192, %v192
  %v196 = vunpack.c.l.s4 1983009808
  %v197 = vunpack.c.0.s8 %v196
  %v198 = vlaneseq
  %v199 = vshrl.u32 %v198, 7
  %v200 = vsub.s32 %v197, %v199
  %v201 = vrot.slane %v192, %v200
  %v203 = vunpack.c.l.s4 1983009808
  %v204 = vunpack.c.0.s8 %v203
  %v205 = vlaneseq
  %v206 = vshrl.u32 %v205, 7
  %v207 = vsub.s32 %v204, %v206
  %v208 = vrot.slane %v194, %v207
  %209 = vrot.lane.b32.xlu0 %v201, 92
  %v210 = vpop.permute.xlu0 %209
  %211 = vrot.lane.b32.xlu0 %v208, 92
  %v212 = vpop.permute.xlu0 %211
  %v213 = vrot.slane %v210, 4
  %v214 = vrot.slane %v212, 4
  %v215 = vsel %vm59, %v213, %v214
  %vm216 = vcmask 752640
  %v217 = vsel %vm216, %v210, %v215
  %v218 = vsel %vm216, %v212, %v214
  %221 = vst [vmem:[#allocation2 + $0x48] sm:$0x33] %v217
  %222 = vst [vmem:[#allocation2 + $0x50] sm:$0x3] %v218
  %v223 = vld [vmem:[%s0] sm:$0xff]
  %v225 = vcombine.low %v223, %v223
  %v227 = vunpack.c.l.s4 1983009808
  %v228 = vunpack.c.0.s8 %v227
  %v229 = vlaneseq
  %v230 = vshrl.u32 %v229, 7
  %v231 = vsub.s32 %v228, %v230
  %v232 = vrot.slane %v225, %v231
  %v234 = vunpack.c.l.s4 1983009808
  %v235 = vunpack.c.0.s8 %v234
  %v236 = vlaneseq
  %v237 = vshrl.u32 %v236, 7
  %v238 = vsub.s32 %v235, %v237
  %v239 = vrot.slane %v223, %v238
  %240 = vrot.lane.b32.xlu0 %v232, 91
  %v241 = vpop.permute.xlu0 %240
  %242 = vrot.lane.b32.xlu0 %v239, 91
  %v243 = vpop.permute.xlu0 %242
  %v244 = vrot.slane %v241, 4
  %v245 = vrot.slane %v243, 4
  %v246 = vsel %vm59, %v244, %v245
  %vm247 = vcmask 744448
  %v248 = vsel %vm247, %v241, %v246
  %v249 = vsel %vm247, %v243, %v245
  %252 = vst [vmem:[#allocation2 + $0x48] sm:$0xcc] %v248
  %253 = vst [vmem:[#allocation2 + $0x50] sm:$0xc] %v249
  %v254 = vld [vmem:[%s0] sm:$0xff]
  %v256 = vcombine.high %v254, %v254
  %v258 = vunpack.c.l.s4 1983009808
  %v259 = vunpack.c.0.s8 %v258
  %v260 = vlaneseq
  %v261 = vshrl.u32 %v260, 7
  %v262 = vsub.s32 %v259, %v261
  %v263 = vrot.slane %v254, %v262
  %v265 = vunpack.c.l.s4 1983009808
  %v266 = vunpack.c.0.s8 %v265
  %v267 = vlaneseq
  %v268 = vshrl.u32 %v267, 7
  %v269 = vsub.s32 %v266, %v268
  %v270 = vrot.slane %v256, %v269
  %271 = vrot.lane.b32.xlu0 %v263, 90
  %v272 = vpop.permute.xlu0 %271
  %273 = vrot.lane.b32.xlu0 %v270, 90
  %v274 = vpop.permute.xlu0 %273
  %v275 = vrot.slane %v272, 4
  %v276 = vrot.slane %v274, 4
  %v277 = vsel %vm59, %v275, %v276
  %vm278 = vcmask 736256
  %v279 = vsel %vm278, %v272, %v277
  %v280 = vsel %vm278, %v274, %v276
  %283 = vst [vmem:[#allocation2 + $0x60] sm:$0x33] %v279
  %284 = vst [vmem:[#allocation2 + $0x68] sm:$0x3] %v280
  %s285 = scalar_lea.vmem %s0, 8
  %v286 = vld [vmem:[%s285] sm:$0x3f]
  %v288 = vcombine.high %v286, %v286
  %v290 = vunpack.c.l.s4 1983009808
  %v291 = vunpack.c.0.s8 %v290
  %v292 = vlaneseq
  %v293 = vshrl.u32 %v292, 7
  %v294 = vsub.s32 %v291, %v293
  %v295 = vrot.slane %v286, %v294
  %v297 = vunpack.c.l.s4 1983009808
  %v298 = vunpack.c.0.s8 %v297
  %v299 = vlaneseq
  %v300 = vshrl.u32 %v299, 7
  %v301 = vsub.s32 %v298, %v300
  %v302 = vrot.slane %v288, %v301
  %305 = vst [vmem:[#allocation2 + $0xc] sm:$0x33] %v295
  %306 = vst [vmem:[#allocation2 + $0x14] sm:$0x3] %v302
  %v307 = vld [vmem:[%s285] sm:$0xff]
  %v309 = vcombine.low %v307, %v307
  %v311 = vunpack.c.l.s4 1983009808
  %v312 = vunpack.c.0.s8 %v311
  %v313 = vlaneseq
  %v314 = vshrl.u32 %v313, 7
  %v315 = vsub.s32 %v312, %v314
  %v316 = vrot.slane %v309, %v315
  %v318 = vunpack.c.l.s4 1983009808
  %v319 = vunpack.c.0.s8 %v318
  %v320 = vlaneseq
  %v321 = vshrl.u32 %v320, 7
  %v322 = vsub.s32 %v319, %v321
  %v323 = vrot.slane %v307, %v322
  %324 = vrot.lane.b32.xlu0 %v316, 127
  %v325 = vpop.permute.xlu0 %324
  %326 = vrot.lane.b32.xlu0 %v323, 127
  %v327 = vpop.permute.xlu0 %326
  %v328 = vrot.slane %v325, 4
  %v329 = vrot.slane %v327, 4
  %v330 = vsel %vm59, %v328, %v329
  %v331 = vsel %vm61, %v325, %v330
  %v332 = vsel %vm61, %v327, %v329
  %335 = vst [vmem:[#allocation2 + $0xc] sm:$0xcc] %v331
  %336 = vst [vmem:[#allocation2 + $0x14] sm:$0xc] %v332
  %v337 = vld [vmem:[%s285] sm:$0xff]
  %v339 = vcombine.high %v337, %v337
  %v341 = vunpack.c.l.s4 1983009808
  %v342 = vunpack.c.0.s8 %v341
  %v343 = vlaneseq
  %v344 = vshrl.u32 %v343, 7
  %v345 = vsub.s32 %v342, %v344
  %v346 = vrot.slane %v337, %v345
  %v348 = vunpack.c.l.s4 1983009808
  %v349 = vunpack.c.0.s8 %v348
  %v350 = vlaneseq
  %v351 = vshrl.u32 %v350, 7
  %v352 = vsub.s32 %v349, %v351
  %v353 = vrot.slane %v339, %v352
  %354 = vrot.lane.b32.xlu0 %v346, 126
  %v355 = vpop.permute.xlu0 %354
  %356 = vrot.lane.b32.xlu0 %v353, 126
  %v357 = vpop.permute.xlu0 %356
  %v358 = vrot.slane %v355, 4
  %v359 = vrot.slane %v357, 4
  %v360 = vsel %vm59, %v358, %v359
  %v361 = vsel %vm92, %v355, %v360
  %v362 = vsel %vm92, %v357, %v359
  %365 = vst [vmem:[#allocation2 + $0x24] sm:$0x33] %v361
  %366 = vst [vmem:[#allocation2 + $0x2c] sm:$0x3] %v362
  %v367 = vld [vmem:[%s285] sm:$0xff]
  %v369 = vcombine.low %v367, %v367
  %v371 = vunpack.c.l.s4 1983009808
  %v372 = vunpack.c.0.s8 %v371
  %v373 = vlaneseq
  %v374 = vshrl.u32 %v373, 7
  %v375 = vsub.s32 %v372, %v374
  %v376 = vrot.slane %v369, %v375
  %v378 = vunpack.c.l.s4 1983009808
  %v379 = vunpack.c.0.s8 %v378
  %v380 = vlaneseq
  %v381 = vshrl.u32 %v380, 7
  %v382 = vsub.s32 %v379, %v381
  %v383 = vrot.slane %v367, %v382
  %384 = vrot.lane.b32.xlu0 %v376, 110
  %v385 = vpop.permute.xlu0 %384
  %386 = vrot.lane.b32.xlu0 %v383, 110
  %v387 = vpop.permute.xlu0 %386
  %v388 = vrot.slane %v385, 4
  %v389 = vrot.slane %v387, 4
  %v390 = vsel %vm59, %v388, %v389
  %v391 = vsel %vm123, %v385, %v390
  %v392 = vsel %vm123, %v387, %v389
  %395 = vst [vmem:[#allocation2 + $0x24] sm:$0xcc] %v391
  %396 = vst [vmem:[#allocation2 + $0x2c] sm:$0xc] %v392
  %v397 = vld [vmem:[%s285] sm:$0xff]
  %v399 = vcombine.high %v397, %v397
  %v401 = vunpack.c.l.s4 1983009808
  %v402 = vunpack.c.0.s8 %v401
  %v403 = vlaneseq
  %v404 = vshrl.u32 %v403, 7
  %v405 = vsub.s32 %v402, %v404
  %v406 = vrot.slane %v397, %v405
  %v408 = vunpack.c.l.s4 1983009808
  %v409 = vunpack.c.0.s8 %v408
  %v410 = vlaneseq
  %v411 = vshrl.u32 %v410, 7
  %v412 = vsub.s32 %v409, %v411
  %v413 = vrot.slane %v399, %v412
  %414 = vrot.lane.b32.xlu0 %v406, 109
  %v415 = vpop.permute.xlu0 %414
  %416 = vrot.lane.b32.xlu0 %v413, 109
  %v417 = vpop.permute.xlu0 %416
  %v418 = vrot.slane %v415, 4
  %v419 = vrot.slane %v417, 4
  %v420 = vsel %vm59, %v418, %v419
  %v421 = vsel %vm154, %v415, %v420
  %v422 = vsel %vm154, %v417, %v419
  %425 = vst [vmem:[#allocation2 + $0x3c] sm:$0x33] %v421
  %426 = vst [vmem:[#allocation2 + $0x44] sm:$0x3] %v422
  %v427 = vld [vmem:[%s285] sm:$0xff]
  %v429 = vcombine.low %v427, %v427
  %v431 = vunpack.c.l.s4 1983009808
  %v432 = vunpack.c.0.s8 %v431
  %v433 = vlaneseq
  %v434 = vshrl.u32 %v433, 7
  %v435 = vsub.s32 %v432, %v434
  %v436 = vrot.slane %v429, %v435
  %v438 = vunpack.c.l.s4 1983009808
  %v439 = vunpack.c.0.s8 %v438
  %v440 = vlaneseq
  %v441 = vshrl.u32 %v440, 7
  %v442 = vsub.s32 %v439, %v441
  %v443 = vrot.slane %v427, %v442
  %444 = vrot.lane.b32.xlu0 %v436, 108
  %v445 = vpop.permute.xlu0 %444
  %446 = vrot.lane.b32.xlu0 %v443, 108
  %v447 = vpop.permute.xlu0 %446
  %v448 = vrot.slane %v445, 4
  %v449 = vrot.slane %v447, 4
  %v450 = vsel %vm59, %v448, %v449
  %v451 = vsel %vm185, %v445, %v450
  %v452 = vsel %vm185, %v447, %v449
  %455 = vst [vmem:[#allocation2 + $0x3c] sm:$0xcc] %v451
  %456 = vst [vmem:[#allocation2 + $0x44] sm:$0xc] %v452
  %v457 = vld [vmem:[%s285] sm:$0xff]
  %v459 = vcombine.high %v457, %v457
  %v461 = vunpack.c.l.s4 1983009808
  %v462 = vunpack.c.0.s8 %v461
  %v463 = vlaneseq
  %v464 = vshrl.u32 %v463, 7
  %v465 = vsub.s32 %v462, %v464
  %v466 = vrot.slane %v457, %v465
  %v468 = vunpack.c.l.s4 1983009808
  %v469 = vunpack.c.0.s8 %v468
  %v470 = vlaneseq
  %v471 = vshrl.u32 %v470, 7
  %v472 = vsub.s32 %v469, %v471
  %v473 = vrot.slane %v459, %v472
  %474 = vrot.lane.b32.xlu0 %v466, 92
  %v475 = vpop.permute.xlu0 %474
  %476 = vrot.lane.b32.xlu0 %v473, 92
  %v477 = vpop.permute.xlu0 %476
  %v478 = vrot.slane %v475, 4
  %v479 = vrot.slane %v477, 4
  %v480 = vsel %vm59, %v478, %v479
  %v481 = vsel %vm216, %v475, %v480
  %v482 = vsel %vm216, %v477, %v479
  %485 = vst [vmem:[#allocation2 + $0x54] sm:$0x33] %v481
  %486 = vst [vmem:[#allocation2 + $0x5c] sm:$0x3] %v482
  %v487 = vld [vmem:[%s285] sm:$0xff]
  %v489 = vcombine.low %v487, %v487
  %v491 = vunpack.c.l.s4 1983009808
  %v492 = vunpack.c.0.s8 %v491
  %v493 = vlaneseq
  %v494 = vshrl.u32 %v493, 7
  %v495 = vsub.s32 %v492, %v494
  %v496 = vrot.slane %v489, %v495
  %v498 = vunpack.c.l.s4 1983009808
  %v499 = vunpack.c.0.s8 %v498
  %v500 = vlaneseq
  %v501 = vshrl.u32 %v500, 7
  %v502 = vsub.s32 %v499, %v501
  %v503 = vrot.slane %v487, %v502
  %504 = vrot.lane.b32.xlu0 %v496, 91
  %v505 = vpop.permute.xlu0 %504
  %506 = vrot.lane.b32.xlu0 %v503, 91
  %v507 = vpop.permute.xlu0 %506
  %v508 = vrot.slane %v505, 4
  %v509 = vrot.slane %v507, 4
  %v510 = vsel %vm59, %v508, %v509
  %v511 = vsel %vm247, %v505, %v510
  %v512 = vsel %vm247, %v507, %v509
  %515 = vst [vmem:[#allocation2 + $0x54] sm:$0xcc] %v511
  %516 = vst [vmem:[#allocation2 + $0x5c] sm:$0xc] %v512
  %v517 = vld [vmem:[%s285] sm:$0xff]
  %v519 = vcombine.high %v517, %v517
  %v521 = vunpack.c.l.s4 1983009808
  %v522 = vunpack.c.0.s8 %v521
  %v523 = vlaneseq
  %v524 = vshrl.u32 %v523, 7
  %v525 = vsub.s32 %v522, %v524
  %v526 = vrot.slane %v517, %v525
  %v528 = vunpack.c.l.s4 1983009808
  %v529 = vunpack.c.0.s8 %v528
  %v530 = vlaneseq
  %v531 = vshrl.u32 %v530, 7
  %v532 = vsub.s32 %v529, %v531
  %v533 = vrot.slane %v519, %v532
  %534 = vrot.lane.b32.xlu0 %v526, 90
  %v535 = vpop.permute.xlu0 %534
  %536 = vrot.lane.b32.xlu0 %v533, 90
  %v537 = vpop.permute.xlu0 %536
  %v538 = vrot.slane %v535, 4
  %v539 = vrot.slane %v537, 4
  %v540 = vsel %vm59, %v538, %v539
  %v541 = vsel %vm278, %v535, %v540
  %v542 = vsel %vm278, %v537, %v539
  %545 = vst [vmem:[#allocation2 + $0x6c] sm:$0x33] %v541
  %546 = vst [vmem:[#allocation2 + $0x74] sm:$0x3] %v542
  %v547 = vld [vmem:[%s1] sm:$0xf]
  %v548 = vld [vmem:[#allocation2] sm:$0xff]
  %v549 = vld [vmem:[#allocation2 + $0x8] sm:$0xff]
  %v550 = vld [vmem:[#allocation2 + $0x10] sm:$0xff]
  %v551 = vld [vmem:[#allocation2 + $0x18] sm:$0xff]
  %v552 = vld [vmem:[#allocation2 + $0x20] sm:$0xff]
  %v553 = vld [vmem:[#allocation2 + $0x28] sm:$0xff]
  %v554 = vld [vmem:[#allocation2 + $0x30] sm:$0xff]
  %v555 = vld [vmem:[#allocation2 + $0x38] sm:$0xff]
  %v556 = vld [vmem:[#allocation2 + $0x40] sm:$0xff]
  %v557 = vld [vmem:[#allocation2 + $0x48] sm:$0xff]
  %v558 = vld [vmem:[#allocation2 + $0x50] sm:$0xff]
  %v559 = vld [vmem:[#allocation2 + $0x58] sm:$0xff]
  %v560 = vld [vmem:[#allocation2 + $0x60] sm:$0x33]
  %v561 = vld [vmem:[#allocation2 + $0x68] sm:$0x33]
  %v562 = vld [vmem:[#allocation2 + $0x70] sm:$0x33]
  %v563 = vld [vmem:[%s2] sm:$0xff]
  %565 = vset.pattern.permute.xlu0 0
  %566 = vperm.xlu0 %565, %v563
  %v567 = vpop.permute.xlu0 %566
  %v584 = vunpack.c.l.b16 %v548
  %v585 = vunpack.c.h.b16 %v548
  %v586 = vunpack.c.l.b16 %v549
  %v587 = vunpack.c.h.b16 %v549
  %v588 = vunpack.c.l.b16 %v550
  %v589 = vunpack.c.h.b16 %v550
  %v590 = vunpack.c.l.b16 %v551
  %v591 = vunpack.c.h.b16 %v551
  %v592 = vunpack.c.l.b16 %v552
  %v593 = vunpack.c.h.b16 %v552
  %v594 = vunpack.c.l.b16 %v553
  %v595 = vunpack.c.h.b16 %v553
  %v596 = vunpack.c.l.b16 %v554
  %v597 = vunpack.c.h.b16 %v554
  %v598 = vunpack.c.l.b16 %v555
  %v599 = vunpack.c.h.b16 %v555
  %v600 = vunpack.c.l.b16 %v556
  %v601 = vunpack.c.h.b16 %v556
  %v602 = vunpack.c.l.b16 %v557
  %v603 = vunpack.c.h.b16 %v557
  %v604 = vunpack.c.l.b16 %v558
  %v605 = vunpack.c.h.b16 %v558
  %v606 = vunpack.c.l.b16 %v559
  %v607 = vunpack.c.h.b16 %v559
  %v608 = vunpack.c.l.b16 %v560
  %v609 = vunpack.c.h.b16 %v560
  %v610 = vunpack.c.l.b16 %v561
  %v611 = vunpack.c.h.b16 %v561
  %v612 = vunpack.c.l.b16 %v562
  %v613 = vunpack.c.h.b16 %v562
  %v614 = vpack.c.b16 %v590, %v584
  %v615 = vpack.c.b16 %v591, %v585
  %v616 = vpack.c.b16 %v592, %v586
  %v617 = vpack.c.b16 %v593, %v587
  %v618 = vpack.c.b16 %v594, %v588
  %v619 = vpack.c.b16 %v595, %v589
  %v620 = vpack.c.b16 %v602, %v596
  %v621 = vpack.c.b16 %v603, %v597
  %v622 = vpack.c.b16 %v604, %v598
  %v623 = vpack.c.b16 %v605, %v599
  %v624 = vpack.c.b16 %v606, %v600
  %v625 = vpack.c.b16 %v607, %v601
  %v626 = vpack.c.b16 %v608, %v608
  %v627 = vpack.c.b16 %v609, %v609
  %v628 = vpack.c.b16 %v610, %v610
  %v629 = vpack.c.b16 %v611, %v611
  %v630 = vpack.c.b16 %v612, %v612
  %v631 = vpack.c.b16 %v613, %v613
  %vm644 = vcmask 293888
  %v646 = vsel %vm644, %v547, 0
  %vm648 = vcmask 1041408
  %v650 = vsel %vm648, %v626, 0
  %v653 = vsel %vm648, %v627, 0
  %v656 = vsel %vm648, %v628, 0
  %v659 = vsel %vm648, %v629, 0
  %v662 = vsel %vm648, %v630, 0
  %v665 = vsel %vm648, %v631, 0
  %667 = vmatprep.subr.bf16.mxu0 %v615
  %668 = vmatpush1.bf16.msra.mxu0 %v614
  %669 = vmatprep.subr.bf16.mxu0 %v621
  %670 = vmatpush1.bf16.msra.mxu0 %v620
  %671 = vmatprep.subr.bf16.mxu0 %v653
  %672 = vmatpush1.bf16.msra.mxu0 %v650
  %673 = vmatprep.subr.bf16.mxu0 0
  %674 = vmatpush1.bf16.msra.mxu0 0
  %675 = vmatprep.subr.bf16.mxu0 0
  %676 = vmatpush1.bf16.msra.mxu0 0
  %677 = vmatprep.subr.bf16.mxu0 0
  %678 = vmatpush1.bf16.msra.mxu0 0
  %679 = vmatprep.subr.bf16.mxu0 0
  %680 = vmatpush1.bf16.msra.mxu0 0
  %681 = vmatprep.subr.bf16.mxu0 0
  %682 = vmatpush1.bf16.msra.mxu0 0
  %683 = vmatprep.subr.bf16.mxu0 0
  %684 = vmatpush1.bf16.msra.mxu0 0
  %685 = vmatprep.subr.bf16.mxu0 0
  %686 = vmatpush1.bf16.msra.mxu0 0
  %687 = vmatprep.subr.bf16.mxu0 0
  %688 = vmatpush1.bf16.msra.mxu0 0
  %689 = vmatprep.subr.bf16.mxu0 0
  %690 = vmatpush1.bf16.msra.mxu0 0
  %691 = vmatprep.subr.bf16.mxu0 0
  %692 = vmatpush1.bf16.msra.mxu0 0
  %693 = vmatprep.subr.bf16.mxu0 0
  %694 = vmatpush1.bf16.msra.mxu0 0
  %695 = vmatprep.subr.bf16.mxu0 0
  %696 = vmatpush1.bf16.msra.mxu0 0
  %697 = vmatprep.subr.bf16.mxu0 0
  %698 = vmatpush1.bf16.msra.mxu0 0
  %699 = vmatprep.mubr.bf16.mxu0 0
  %700 = vmatmul.mubr.bf16.gmra.mrb[0].mxu0 %v646
  %v701 = vpop.f32.mrb[0].mxu0
  %v702 = vadd.f32 %v567, %v701
  %v703 = vpop.f32.mrb[0].mxu0
  %v704 = vadd.f32 %v567, %v703
  %v705 = vpop.f32.mrb[0].mxu0
  %v706 = vpop.f32.mrb[0].mxu0
  %707 = vdwg.mxu0
  %708 = vmatprep.subr.bf16.mxu0 %v617
  %709 = vmatpush1.bf16.msra.mxu0 %v616
  %710 = vmatprep.subr.bf16.mxu0 %v623
  %711 = vmatpush1.bf16.msra.mxu0 %v622
  %712 = vmatprep.subr.bf16.mxu0 %v659
  %713 = vmatpush1.bf16.msra.mxu0 %v656
  %714 = vmatprep.subr.bf16.mxu0 0
  %715 = vmatpush1.bf16.msra.mxu0 0
  %716 = vmatprep.subr.bf16.mxu0 0
  %717 = vmatpush1.bf16.msra.mxu0 0
  %718 = vmatprep.subr.bf16.mxu0 0
  %719 = vmatpush1.bf16.msra.mxu0 0
  %720 = vmatprep.subr.bf16.mxu0 0
  %721 = vmatpush1.bf16.msra.mxu0 0
  %722 = vmatprep.subr.bf16.mxu0 0
  %723 = vmatpush1.bf16.msra.mxu0 0
  %724 = vmatprep.subr.bf16.mxu0 0
  %725 = vmatpush1.bf16.msra.mxu0 0
  %726 = vmatprep.subr.bf16.mxu0 0
  %727 = vmatpush1.bf16.msra.mxu0 0
  %728 = vmatprep.subr.bf16.mxu0 0
  %729 = vmatpush1.bf16.msra.mxu0 0
  %730 = vmatprep.subr.bf16.mxu0 0
  %731 = vmatpush1.bf16.msra.mxu0 0
  %732 = vmatprep.subr.bf16.mxu0 0
  %733 = vmatpush1.bf16.msra.mxu0 0
  %734 = vmatprep.subr.bf16.mxu0 0
  %735 = vmatpush1.bf16.msra.mxu0 0
  %736 = vmatprep.subr.bf16.mxu0 0
  %737 = vmatpush1.bf16.msra.mxu0 0
  %738 = vmatprep.subr.bf16.mxu0 0
  %739 = vmatpush1.bf16.msra.mxu0 0
  %740 = vmatprep.mubr.bf16.mxu0 0
  %741 = vmatmul.mubr.bf16.gmra.mrb[0].mxu0 %v646
  %v742 = vpop.f32.mrb[0].mxu0
  %v743 = vadd.f32 %v567, %v742
  %v744 = vpop.f32.mrb[0].mxu0
  %v745 = vadd.f32 %v567, %v744
  %v746 = vpop.f32.mrb[0].mxu0
  %v747 = vpop.f32.mrb[0].mxu0
  %748 = vdwg.mxu0
  %749 = vmatprep.subr.bf16.mxu0 %v619
  %750 = vmatpush1.bf16.msra.mxu0 %v618
  %751 = vmatprep.subr.bf16.mxu0 %v625
  %752 = vmatpush1.bf16.msra.mxu0 %v624
  %753 = vmatprep.subr.bf16.mxu0 %v665
  %754 = vmatpush1.bf16.msra.mxu0 %v662
  %755 = vmatprep.subr.bf16.mxu0 0
  %756 = vmatpush1.bf16.msra.mxu0 0
  %757 = vmatprep.subr.bf16.mxu0 0
  %758 = vmatpush1.bf16.msra.mxu0 0
  %759 = vmatprep.subr.bf16.mxu0 0
  %760 = vmatpush1.bf16.msra.mxu0 0
  %761 = vmatprep.subr.bf16.mxu0 0
  %762 = vmatpush1.bf16.msra.mxu0 0
  %763 = vmatprep.subr.bf16.mxu0 0
  %764 = vmatpush1.bf16.msra.mxu0 0
  %765 = vmatprep.subr.bf16.mxu0 0
  %766 = vmatpush1.bf16.msra.mxu0 0
  %767 = vmatprep.subr.bf16.mxu0 0
  %768 = vmatpush1.bf16.msra.mxu0 0
  %769 = vmatprep.subr.bf16.mxu0 0
  %770 = vmatpush1.bf16.msra.mxu0 0
  %771 = vmatprep.subr.bf16.mxu0 0
  %772 = vmatpush1.bf16.msra.mxu0 0
  %773 = vmatprep.subr.bf16.mxu0 0
  %774 = vmatpush1.bf16.msra.mxu0 0
  %775 = vmatprep.subr.bf16.mxu0 0
  %776 = vmatpush1.bf16.msra.mxu0 0
  %777 = vmatprep.subr.bf16.mxu0 0
  %778 = vmatpush1.bf16.msra.mxu0 0
  %779 = vmatprep.subr.bf16.mxu0 0
  %780 = vmatpush1.bf16.msra.mxu0 0
  %781 = vmatprep.mubr.bf16.mxu0 0
  %782 = vmatmul.mubr.bf16.gmra.mrb[0].mxu0 %v646
  %v783 = vpop.f32.mrb[0].mxu0
  %v784 = vadd.f32 %v567, %v783
  %v785 = vpop.f32.mrb[0].mxu0
  %v786 = vadd.f32 %v567, %v785
  %v787 = vpop.f32.mrb[0].mxu0
  %v788 = vpop.f32.mrb[0].mxu0
  %789 = vdwg.mxu0
  %v790 = vxor.u32 %v702, 2147483648
  %v791 = vxor.u32 %v704, 2147483648
  %v792 = vxor.u32 %v743, 2147483648
  %v793 = vxor.u32 %v745, 2147483648
  %v794 = vxor.u32 %v784, 2147483648
  %v795 = vxor.u32 %v786, 2147483648
  %v796 = vmul.f32 %v790, 1.442695
  %v797 = vpow.pop %v796
  %v798 = vmul.f32 %v791, 1.442695
  %v799 = vpow.pop %v798
  %v800 = vmul.f32 %v792, 1.442695
  %v801 = vpow.pop %v800
  %v802 = vmul.f32 %v793, 1.442695
  %v803 = vpow.pop %v802
  %v804 = vmul.f32 %v794, 1.442695
  %v805 = vpow.pop %v804
  %v806 = vmul.f32 %v795, 1.442695
  %v807 = vpow.pop %v806
  %v808 = vadd.f32 %v797, 1.0
  %v809 = vadd.f32 %v799, 1.0
  %v810 = vadd.f32 %v801, 1.0
  %v811 = vadd.f32 %v803, 1.0
  %v812 = vadd.f32 %v805, 1.0
  %v813 = vadd.f32 %v807, 1.0
  %v814 = vrcp.pop %v808
  %v815 = vmul.f32 1.0, %v814
  %v816 = vrcp.pop %v809
  %v817 = vmul.f32 1.0, %v816
  %v818 = vrcp.pop %v810
  %v819 = vmul.f32 1.0, %v818
  %v820 = vrcp.pop %v811
  %v821 = vmul.f32 1.0, %v820
  %v822 = vrcp.pop %v812
  %v823 = vmul.f32 1.0, %v822
  %v824 = vrcp.pop %v813
  %v825 = vmul.f32 1.0, %v824
  %v826 = vmul.f32 %v702, %v815
  %v827 = vmul.f32 %v704, %v817
  %v828 = vmul.f32 %v743, %v819
  %v829 = vmul.f32 %v745, %v821
  %v830 = vmul.f32 %v784, %v823
  %v831 = vmul.f32 %v786, %v825
  %832 = vst [vmem:[%s3] sm:$0xff] %v826
  %833 = vst [vmem:[%s3 + $0x8] sm:$0xff] %v827
  %834 = vst [vmem:[%s3 + $0x10] sm:$0xff] %v828
  %s835 = scalar_lea.vmem %s3, 24
  %836 = vst [vmem:[%s835] sm:$0xff] %v829
  %837 = vst [vmem:[%s835 + $0x8] sm:$0xff] %v830
  %838 = vst [vmem:[%s835 + $0x10] sm:$0xff] %v831
  // Predicated region
  $region14: #{conv_forward.1} parent=0 // pred_check
    _
  $region15: #{conv_forward.1} parent=0 // pred_check_branch
    %840 = sbr.rel (0) target = $region17
  $region16: #{conv_forward.1} parent=0 // pred_region
    _
  $region17: #{conv_forward.1} parent=0 // pred_fallthru
    _
  // Predicated region
  $region18: #{conv_forward.1} parent=0 // pred_check
    _
  $region19: #{conv_forward.1} parent=0 // pred_check_branch
    %842 = sbr.rel (0) target = $region21
  $region20: #{conv_forward.1} parent=0 // pred_region
    _
  $region21: #{conv_forward.1} parent=0 // pred_fallthru
    _

</llo_original>
